<compile_context>
chip_gen: v7x
topology: tpu7x:2x2x1
jax: 0.10.0
libtpu: 0.0.40
codegen_flags: <defaults>
</compile_context>

<pallas_src>
import functools
import math

import jax
import jax.numpy as jnp
from jax.experimental import pallas as pl
from jax.experimental.pallas import tpu as pltpu


# ----------------------------------------------------------------------------
# Kernels
# ----------------------------------------------------------------------------

def _l2norm_lane_kernel(x_ref, o_ref, *, eps):
    """Normalize each row of a (tile_rows, D) block along the lane (last) axis."""
    x = x_ref[...]
    xf = x.astype(jnp.float32)
    sq_sum = jnp.sum(xf * xf, axis=-1, keepdims=True)          # (tile_rows, 1), f32
    inv = jax.lax.rsqrt(jnp.maximum(sq_sum, jnp.float32(eps) * jnp.float32(eps)))
    o_ref[...] = x * inv.astype(x.dtype)                       # scale in input dtype


def _l2norm_sublane_kernel(x_ref, o_ref, *, eps):
    """Normalize a (1, C, tile_cols) block along the channel (sublane) axis.

    Keeps the big trailing axis lane-dense so conv-style inputs (NCHW, dim=1)
    never need an HBM transpose.
    """
    x = x_ref[...]
    xf = x.astype(jnp.float32)
    sq_sum = jnp.sum(xf * xf, axis=1, keepdims=True)            # (1, 1, tile_cols), f32
    inv = jax.lax.rsqrt(jnp.maximum(sq_sum, jnp.float32(eps) * jnp.float32(eps)))
    o_ref[...] = x * inv.astype(x.dtype)


# ----------------------------------------------------------------------------
# Generation-aware sizing
# ----------------------------------------------------------------------------

def _vmem_capacity_bytes():
    try:
        return int(pltpu.get_tpu_info().vmem_capacity_bytes)
    except Exception:
        return 64 * 1024 * 1024          # conservative fallback (v7x-sized)


def _budget():
    """(target bytes per pipelined buffer, vmem_limit_bytes) for this chip."""
    cap = _vmem_capacity_bytes()
    if cap >= 96 * 1024 * 1024:          # v5e / v6e: 128 MiB physical VMEM
        return 8 * 1024 * 1024, 80 * 1024 * 1024
    # v7x: 64 MiB physical VMEM, ~2.3x v6e HBM BW -> larger steps still pay off
    return 6 * 1024 * 1024, 56 * 1024 * 1024


def _sublane_multiple(dtype):
    return {4: 8, 2: 16, 1: 32}.get(jnp.dtype(dtype).itemsize, 8)


# ----------------------------------------------------------------------------
# pallas_call wrappers
# ----------------------------------------------------------------------------

def _l2_normalize_lane(x2d, *, eps, tile_rows=None):
    """Reduce along the trailing (lane) axis of an (M, D) slab."""
    M, D = x2d.shape
    itemsize = jnp.dtype(x2d.dtype).itemsize
    target_buf, vmem_limit = _budget()
    sublane = _sublane_multiple(x2d.dtype)
    if tile_rows is None:
        rows = target_buf // max(D * itemsize, 1)
        rows = max((rows // sublane) * sublane, sublane)
        rows = min(rows, -(-M // sublane) * sublane)
        tile_rows = rows
    # TODO(synk): for extremely wide D (single row tile > VMEM budget) a
    # two-phase lane-tiled reduction would be needed; typical shapes keep D resident.

    cost = pl.CostEstimate(flops=3 * M * D, transcendentals=M,
                           bytes_accessed=2 * M * D * itemsize)
    kernel = functools.partial(_l2norm_lane_kernel, eps=eps)
    return pl.pallas_call(
        kernel,
        out_shape=jax.ShapeDtypeStruct((M, D), x2d.dtype),
        grid_spec=pltpu.PrefetchScalarGridSpec(
            num_scalar_prefetch=0,
            grid=(pl.cdiv(M, tile_rows),),          # ragged last block handled by Pallas
            in_specs=[pl.BlockSpec((tile_rows, D), lambda i: (i, 0))],
            out_specs=pl.BlockSpec((tile_rows, D), lambda i: (i, 0)),
        ),
        compiler_params=pltpu.CompilerParams(
            dimension_semantics=("parallel",),
            vmem_limit_bytes=vmem_limit,
        ),
        cost_estimate=cost,
    )(x2d)


def _l2_normalize_sublane(x3d, *, eps, tile_cols=None):
    """Reduce along the middle (channel / sublane) axis of a (pre, C, post) slab."""
    B, C, L = x3d.shape
    itemsize = jnp.dtype(x3d.dtype).itemsize
    target_buf, vmem_limit = _budget()
    if tile_cols is None:
        if L <= 128:
            tile_cols = L                               # full trailing dim (constraint-exempt)
        else:
            cols = target_buf // max(C * itemsize, 1)
            cols = max((cols // 128) * 128, 128)
            cols = min(cols, -(-L // 128) * 128)
            tile_cols = cols
    # TODO(synk): if C * 128 * itemsize alone exceeds the VMEM budget, a two-phase
    # channel-tiled reduction would be needed; typical channel counts are small.

    cost = pl.CostEstimate(flops=3 * B * C * L, transcendentals=B * L,
                           bytes_accessed=2 * B * C * L * itemsize)
    kernel = functools.partial(_l2norm_sublane_kernel, eps=eps)
    return pl.pallas_call(
        kernel,
        out_shape=jax.ShapeDtypeStruct((B, C, L), x3d.dtype),
        grid_spec=pltpu.PrefetchScalarGridSpec(
            num_scalar_prefetch=0,
            grid=(B, pl.cdiv(L, tile_cols)),            # ragged trailing tile handled by Pallas
            in_specs=[pl.BlockSpec((1, C, tile_cols), lambda b, j: (b, 0, j))],
            out_specs=pl.BlockSpec((1, C, tile_cols), lambda b, j: (b, 0, j)),
        ),
        compiler_params=pltpu.CompilerParams(
            dimension_semantics=("parallel", "parallel"),
            vmem_limit_bytes=vmem_limit,
        ),
        cost_estimate=cost,
    )(x3d)


def l2_normalize(x, *, dim=1, eps=1e-12):
    """L2-normalize `x` along `dim` (torch.nn.functional.normalize, p=2) on TPU."""
    dim = dim % x.ndim
    if dim == x.ndim - 1:
        # Trailing-axis reduction: flatten leading dims (free reshape), lane kernel.
        D = x.shape[-1]
        M = math.prod(x.shape[:-1])
        out = _l2_normalize_lane(x.reshape(M, D), eps=eps)
        return out.reshape(x.shape)
    # Non-trailing dim (e.g. NCHW, dim=1): reshape (free) to (pre, C, post) and
    # reduce over the sublane axis -> no HBM transpose.
    pre = math.prod(x.shape[:dim])
    C = x.shape[dim]
    post = math.prod(x.shape[dim + 1:])
    out = _l2_normalize_sublane(x.reshape(pre, C, post), eps=eps)
    return out.reshape(x.shape)


def l2_normalize_ref(x, *, dim=1, eps=1e-12):
    # Pure-JAX reference mirroring F.normalize semantics.
    xf = x.astype(jnp.float32)
    norm = jnp.sqrt(jnp.sum(jnp.square(xf), axis=dim, keepdims=True))
    return (xf / jnp.maximum(norm, eps)).astype(x.dtype)


if __name__ == "__main__":
    key = jax.random.PRNGKey(0)
    k0, k1, k2, k3 = jax.random.split(key, 4)

    # (batch, hidden), dim=1 is the last axis -> lane-reduction kernel.
    x = jax.random.normal(k0, (8, 256), dtype=jnp.float32)
    out = jax.block_until_ready(l2_normalize(x, dim=1, eps=1e-12))
    ref = l2_normalize_ref(x, dim=1, eps=1e-12)
    assert out.shape == x.shape and out.dtype == x.dtype
    assert jnp.allclose(out, ref, atol=1e-6, rtol=1e-6)

    # Conv-style NCHW input, dim=1 not last -> sublane-reduction kernel (no transpose).
    x4 = jax.random.normal(k1, (2, 4, 16, 16), dtype=jnp.float32)
    out4 = jax.block_until_ready(l2_normalize(x4, dim=1, eps=1e-12))
    ref4 = l2_normalize_ref(x4, dim=1, eps=1e-12)
    assert out4.shape == x4.shape and out4.dtype == x4.dtype
    assert jnp.allclose(out4, ref4, atol=1e-6, rtol=1e-6)

    # Ragged rows (M % tile_rows != 0), narrow D, and an all-zero row.
    x2 = jax.random.normal(k2, (6, 40), dtype=jnp.float32)
    x2 = x2.at[3].set(0.0)
    out2 = jax.block_until_ready(l2_normalize(x2, dim=1, eps=1e-12))
    ref2 = l2_normalize_ref(x2, dim=1, eps=1e-12)
    assert jnp.allclose(out2, ref2, atol=1e-6, rtol=1e-6)

    # bf16 input: f32 sum-of-squares, final scale performed in bf16.
    x3 = jax.random.normal(k3, (16, 128), dtype=jnp.bfloat16)
    out3 = jax.block_until_ready(l2_normalize(x3, dim=1, eps=1e-12))
    ref3 = l2_normalize_ref(x3, dim=1, eps=1e-12)
    assert jnp.allclose(out3.astype(jnp.float32), ref3.astype(jnp.float32),
                        atol=2e-2, rtol=2e-2)

    print("KERNEL_OK")
</pallas_src>

<mosaic_0001>
module attributes {stable_mosaic.version = 11 : i64} {
  func.func @_l2norm_lane_kernel(%arg0: i32, %arg1: memref<8x256xf32, #tpu.memory_space<vmem>>, %arg2: memref<8x256xf32, #tpu.memory_space<vmem>>) attributes {dimension_semantics = [#tpu.dimension_semantics<parallel>], iteration_bounds = array<i64: 1>, scalar_prefetch = 0 : i64, scratch_operands = 0 : i64, tpu.core_type = #tpu.core_type<tc>, window_params = [{transform_indices = @transform_0, window_bounds = array<i64: 8, 256>}, {transform_indices = @transform_1, window_bounds = array<i64: 8, 256>}]} {
    %c0 = arith.constant 0 : index
    %c0_0 = arith.constant 0 : index
    %0 = vector.load %arg1[%c0, %c0_0] : memref<8x256xf32, #tpu.memory_space<vmem>>, vector<8x256xf32>
    %1 = arith.mulf %0, %0 : vector<8x256xf32>
    %cst = arith.constant dense<0.000000e+00> : vector<8xf32>
    %2 = vector.multi_reduction <add>, %1, %cst [1] : vector<8x256xf32> to vector<8xf32>
    %3 = vector.shape_cast %2 : vector<8xf32> to vector<8x1xf32>
    %cst_1 = arith.constant 9.99999996E-13 : f32
    %cst_2 = arith.constant 9.99999996E-13 : f32
    %4 = arith.mulf %cst_1, %cst_2 : f32
    %5 = vector.broadcast %4 : f32 to vector<8x1xf32>
    %6 = arith.maximumf %3, %5 : vector<8x1xf32>
    %7 = math.rsqrt %6 : vector<8x1xf32>
    %8 = vector.broadcast %7 : vector<8x1xf32> to vector<8x256xf32>
    %9 = arith.mulf %0, %8 : vector<8x256xf32>
    %c0_3 = arith.constant 0 : index
    %c0_4 = arith.constant 0 : index
    %10 = vector.load %arg2[%c0_3, %c0_4] : memref<8x256xf32, #tpu.memory_space<vmem>>, vector<8x256xf32>
    tpu.vector_store %arg2[%c0_3, %c0_4], %9 {strides = array<i32>} : memref<8x256xf32, #tpu.memory_space<vmem>>, vector<8x256xf32>,
    return
  }
  func.func @transform_0(%arg0: i32) -> (i32, i32) {
    %c0_i32 = arith.constant 0 : i32
    %c0_i32_0 = arith.constant 0 : i32
    return %arg0, %c0_i32 : i32, i32
  }
  func.func @transform_1(%arg0: i32) -> (i32, i32) {
    %c0_i32 = arith.constant 0 : i32
    %c0_i32_0 = arith.constant 0 : i32
    return %arg0, %c0_i32 : i32, i32
  }
}

</mosaic_0001>

<llo_original>
// kernel: tpu_custom_call.1
$region0: #{tpu_custom_call.1}
  #allocation0 [shape = 'u32[]', space=smem, size = 0x4, offset = 0x4, fixed_abs, tag = 'smem constant byte address 0x4 - core index']
  #allocation1 [shape = 'u32[144,128]{1,0:T(1,128)}', space=vmem, size = 0x12000, scoped, tag = 'internal scratch']
  %s0 = inlined_call_operand.hbm [shape: f32[8,256], index: 0, kind: input, shape index: {}]
  %s1 = inlined_call_operand.hbm [shape: f32[8,256], index: 1, kind: output, shape index: {}]
  %s2 = sld [smem:[#allocation0]]
  $region18: #{tpu_custom_call.1} parent=0
    _
  %s4 = ssub.s32 1, %s2
  %s5 = scalar_select 0, %s4, %s2
  $region1: #{tpu_custom_call.1} parent=0
    #allocation2 [shape = 'u8[8192]{0}', space=vmem, size = 0x2000, scoped, tag = 'input window, operand 0, single buffered']
    #allocation3 [shape = 's32[1]{0}', space=sflag, size = 0x4, scoped, tag = 'scoped memory for tpu_custom_call.1']
    #allocation4 [shape = 's32[1]{0}', space=sflag, size = 0x4, scoped, tag = 'scoped memory for tpu_custom_call.1']
    #allocation5 [shape = 'u8[8192]{0}', space=vmem, size = 0x2000, scoped, tag = 'output window, operand 0, single buffered']
    %6 = vsyncpa [#allocation3], 0
    %7 = vsyncpa [#allocation4], 0
    // Predicated region
    $region2: #{tpu_custom_call.1} parent=1 // pred_check
      _
    $region3: #{tpu_custom_call.1} parent=1 // pred_check_branch
      %9 = sbr.rel (0) target = $region5
    $region4: #{tpu_custom_call.1} parent=1 // pred_region
      %s11 = ssub.s32 256, 256
      %12 = vsyncadd [#allocation3], %s11
      %s14 = sshll.u32 [#allocation2], 4
      %s15 = int_to_ptr.vmem [resolvable:$true] %s14
      %17 = dma.hbm_to_vmem [thread:$0]  %s0, 256, %s15, [#allocation3]
    $region5: #{tpu_custom_call.1} parent=1 // pred_fallthru
      _
    // Predicated region
    $region6: #{tpu_custom_call.1} parent=1 // pred_check
      _
    $region7: #{tpu_custom_call.1} parent=1 // pred_check_branch
      %19 = sbr.rel (0) target = $region9
    $region8: #{tpu_custom_call.1} parent=1 // pred_region
      %20 = dma.done [#allocation3], 256
    $region9: #{tpu_custom_call.1} parent=1 // pred_fallthru
      _
    %v21 = vld [vmem:[#allocation2] sm:$0xff]
    %v22 = vld [vmem:[#allocation2 + $0x8] sm:$0xff]
    %v23 = vmul.f32 %v21, %v21
    %v24 = vmul.f32 %v22, %v22
    %v25 = vadd.f32 %v23, %v24
    %26 = vadd.xlane.f32.xlu0 %v25
    %v27 = vpop.xlane.xlu0 %26
    %v28 = vmax.f32 %v27, 1e-24
    %v29 = vrsqrt.pop %v28
    %v30 = vmul.f32 %v21, %v29
    %v31 = vmul.f32 %v22, %v29
    %32 = vst [vmem:[#allocation5] sm:$0xff] %v30
    %33 = vst [vmem:[#allocation5 + $0x8] sm:$0xff] %v31
    // Predicated region
    $region10: #{tpu_custom_call.1} parent=1 // pred_check
      _
    $region11: #{tpu_custom_call.1} parent=1 // pred_check_branch
      %35 = sbr.rel (0) target = $region13
    $region12: #{tpu_custom_call.1} parent=1 // pred_region
      %s37 = ssub.s32 256, 256
      %38 = vsyncadd [#allocation4], %s37
      %s40 = sshll.u32 [#allocation5], 4
      %s41 = int_to_ptr.vmem [resolvable:$true] %s40
      %43 = dma.vmem_to_hbm [thread:$0]  %s41, 256, %s1, [#allocation4]
    $region13: #{tpu_custom_call.1} parent=1 // pred_fallthru
      _
    // Predicated region
    $region14: #{tpu_custom_call.1} parent=1 // pred_check
      _
    $region15: #{tpu_custom_call.1} parent=1 // pred_check_branch
      %45 = sbr.rel (0) target = $region17
    $region16: #{tpu_custom_call.1} parent=1 // pred_region
      %46 = dma.done [#allocation4], 256
    $region17: #{tpu_custom_call.1} parent=1 // pred_fallthru
      _
    %47 = vsyncpa [#allocation3], 1
    %48 = vsyncpa [#allocation4], 1

</llo_original>
